<compile_context>
chip_gen: v7x
topology: tpu7x:2x2x1
jax: 0.10.0
libtpu: 0.0.40
codegen_flags: <defaults>
</compile_context>

<pallas_src>
import jax
import jax.numpy as jnp
from jax.experimental import pallas as pl
from jax.experimental.pallas import tpu as pltpu


def _pick_tile(dim, desired, align):
    """Largest `align`-multiple tile <= desired that divides dim; else full dim.

    Full-dim blocks are always legal Mosaic block shapes, so this never
    produces a shape the compiler rejects.
    """
    if dim <= desired:
        return dim
    t = (desired // align) * align
    while t >= align:
        if dim % t == 0:
            return t
        t -= align
    return dim


def _lora_kernel(scale_ref, wts_ref, a_ref, b_ref, o_ref):
    # Rank-R low-rank update on the MXU (f32 accumulate), fused residual add.
    # Epilogue kept minimal: one matmul, one mul, one add, one cast.
    delta = jnp.dot(a_ref[...], b_ref[...], preferred_element_type=jnp.float32)
    o_ref[...] = (wts_ref[...].astype(jnp.float32)
                  + delta * scale_ref[0]).astype(o_ref.dtype)


def lora_forward(wts, A, B, scale, *, tm=None, tn=None, enabled=True,
                 merge_in_place=False):
    """Compute wts + (A @ B) * scale with a Pallas TPU kernel.

    wts: [M, N], A: [M, R], B: [R, N], scale: python float or 0-d value.
    Set merge_in_place=True to alias the output onto the wts buffer
    (typical LoRA weight-merge; avoids a second M x N HBM allocation).
    """
    if not enabled:
        return wts

    M, N = wts.shape
    R = A.shape[1]
    w_bytes = jnp.dtype(wts.dtype).itemsize
    ab_bytes = jnp.dtype(A.dtype).itemsize

    # Sublane packing for the wts dtype: f32 -> 8, bf16 -> 16, int8/fp8 -> 32.
    sub_align = 8 * max(1, 4 // w_bytes)

    # Real tile defaults so the grid has many steps and BlockSpec
    # double-buffering pipelines DMA against the (tiny) compute:
    #   tm ~ 512, tn lane-dense (multiple of 128) and large (~2048).
    # 512x2048 f32 tiles are 4 MiB each -> ~20 MiB double-buffered, which fits
    # the scoped-VMEM budget on every generation (incl. v7x's 64 MiB VMEM).
    tm = tm if tm is not None else _pick_tile(M, 512, sub_align)
    tn = tn if tn is not None else _pick_tile(N, 2048, 128)
    assert M % tm == 0 and N % tn == 0, "tile must divide the weight dims"

    # Grid order (i, j) with j (the N axis) innermost: A's block index (i, 0)
    # is constant across consecutive steps, so its DMA is not re-issued.
    grid = (M // tm, N // tn)

    # Explicit VMEM budget: double-buffered wts/out/A/B tiles + f32 delta.
    vmem_bytes = (2 * tm * tn * w_bytes * 2            # wts + out, 2 bufs each
                  + 2 * (tm * R + R * tn) * ab_bytes   # A + B, 2 bufs each
                  + tm * tn * 4)                       # f32 delta intermediate
    vmem_limit = int(min(max(vmem_bytes * 2, 16 * 1024 * 1024),
                         64 * 1024 * 1024))

    # Bandwidth-heavy op: tell XLA's scheduler so it overlaps neighbors well.
    cost = pl.CostEstimate(
        flops=2 * M * N * R + 2 * M * N,
        transcendentals=0,
        bytes_accessed=2 * M * N * w_bytes + (M * R + R * N) * ab_bytes)

    # scale lives in SMEM (not baked into the trace) so changing it at runtime
    # does not force a recompile.
    scale_arr = jnp.asarray([scale], dtype=jnp.float32)

    return pl.pallas_call(
        _lora_kernel,
        out_shape=jax.ShapeDtypeStruct((M, N), wts.dtype),
        grid_spec=pltpu.PrefetchScalarGridSpec(
            num_scalar_prefetch=0,
            grid=grid,
            in_specs=[
                pl.BlockSpec(memory_space=pltpu.MemorySpace.SMEM),  # scale
                pl.BlockSpec((tm, tn), lambda i, j: (i, j)),        # wts tile
                pl.BlockSpec((tm, R), lambda i, j: (i, 0)),         # A rows
                pl.BlockSpec((R, tn), lambda i, j: (0, j)),         # B cols
            ],
            out_specs=pl.BlockSpec((tm, tn), lambda i, j: (i, j)),
        ),
        compiler_params=pltpu.CompilerParams(
            # both axes parallel -> grid shards across the 2 TCs on v7x
            dimension_semantics=("parallel", "parallel"),
            vmem_limit_bytes=vmem_limit),
        cost_estimate=cost,
        input_output_aliases={1: 0} if merge_in_place else {},
    )(scale_arr, wts, A, B)


if __name__ == "__main__":
    key = jax.random.PRNGKey(0)
    k_w, k_a, k_b = jax.random.split(key, 3)

    # 1) Tiled path: 256x512 weight, rank-4 adapter, explicit tiles so the grid
    #    has several steps (2x2) while staying small/fast for the demo.
    M, N, R, alpha = 256, 512, 4, 8
    scale = alpha / R
    # PyTorch __init__ uses zeros for A/B; use deterministic random values here
    # so the low-rank path is actually exercised.
    wts = jax.random.normal(k_w, (M, N), jnp.float32)
    A = jax.random.normal(k_a, (M, R), jnp.float32)
    B = jax.random.normal(k_b, (R, N), jnp.float32)

    out = jax.block_until_ready(lora_forward(wts, A, B, scale, tm=128, tn=256))
    ref = wts + jnp.matmul(A, B) * scale
    assert out.shape == ref.shape and out.dtype == ref.dtype
    assert jnp.allclose(out, ref, atol=1e-5, rtol=1e-5)

    # 2) Default-tile path on a tiny module-sized weight (32x64): tiles fall
    #    back to full dims, still correct.
    M2, N2, R2, alpha2 = 32, 64, 4, 2
    scale2 = alpha2 / R2
    wts2 = jax.random.normal(k_w, (M2, N2), jnp.float32)
    A2 = jax.random.normal(k_a, (M2, R2), jnp.float32)
    B2 = jax.random.normal(k_b, (R2, N2), jnp.float32)
    out2 = jax.block_until_ready(lora_forward(wts2, A2, B2, scale2))
    ref2 = wts2 + jnp.matmul(A2, B2) * scale2
    assert jnp.allclose(out2, ref2, atol=1e-5, rtol=1e-5)

    # 3) Disabled path (module's `enabled=False` branch).
    out3 = lora_forward(wts2, A2, B2, scale2, enabled=False)
    assert out3 is wts2

    print("KERNEL_OK")
</pallas_src>

<mosaic_0001>
module attributes {stable_mosaic.version = 11 : i64} {
  func.func @_lora_kernel(%arg0: i32, %arg1: i32, %arg2: memref<1xf32, #tpu.memory_space<smem>>, %arg3: memref<128x256xf32, #tpu.memory_space<vmem>>, %arg4: memref<128x4xf32, #tpu.memory_space<vmem>>, %arg5: memref<4x256xf32, #tpu.memory_space<vmem>>, %arg6: memref<128x256xf32, #tpu.memory_space<vmem>>) attributes {dimension_semantics = [#tpu.dimension_semantics<parallel>, #tpu.dimension_semantics<parallel>], iteration_bounds = array<i64: 2, 2>, scalar_prefetch = 0 : i64, scratch_operands = 0 : i64, tpu.core_type = #tpu.core_type<tc>, window_params = [{transform_indices = @transform_0, window_bounds = array<i64: 1>}, {transform_indices = @transform_1, window_bounds = array<i64: 128, 256>}, {transform_indices = @transform_2, window_bounds = array<i64: 128, 4>}, {transform_indices = @transform_3, window_bounds = array<i64: 4, 256>}, {transform_indices = @transform_4, window_bounds = array<i64: 128, 256>}]} {
    %c0 = arith.constant 0 : index
    %c0_0 = arith.constant 0 : index
    %0 = vector.load %arg4[%c0, %c0_0] : memref<128x4xf32, #tpu.memory_space<vmem>>, vector<128x4xf32>
    %c0_1 = arith.constant 0 : index
    %c0_2 = arith.constant 0 : index
    %1 = vector.load %arg5[%c0_1, %c0_2] : memref<4x256xf32, #tpu.memory_space<vmem>>, vector<4x256xf32>
    %cst = arith.constant dense<0.000000e+00> : vector<128x256xf32>
    %2 = tpu.matmul %0, %1, %cst {dimension_numbers = #tpu.dot_dimension_numbers<[1], [0], [0], [1], [0, 0, 1, 1], [], []>} : vector<128x4xf32>, vector<4x256xf32>, vector<128x256xf32> -> vector<128x256xf32>
    %c0_3 = arith.constant 0 : index
    %c0_4 = arith.constant 0 : index
    %3 = vector.load %arg3[%c0_3, %c0_4] : memref<128x256xf32, #tpu.memory_space<vmem>>, vector<128x256xf32>
    %c0_5 = arith.constant 0 : index
    %4 = memref.load %arg2[%c0_5] : memref<1xf32, #tpu.memory_space<smem>>
    %5 = vector.broadcast %4 : f32 to vector<128x256xf32>
    %6 = arith.mulf %2, %5 : vector<128x256xf32>
    %7 = arith.addf %3, %6 : vector<128x256xf32>
    %c0_6 = arith.constant 0 : index
    %c0_7 = arith.constant 0 : index
    %8 = vector.load %arg6[%c0_6, %c0_7] : memref<128x256xf32, #tpu.memory_space<vmem>>, vector<128x256xf32>
    tpu.vector_store %arg6[%c0_6, %c0_7], %7 {strides = array<i32>} : memref<128x256xf32, #tpu.memory_space<vmem>>, vector<128x256xf32>,
    return
  }
  func.func @transform_0(%arg0: i32, %arg1: i32) -> i32 {
    %c0_i32 = arith.constant 0 : i32
    %c0_i32_0 = arith.constant 0 : i32
    return %c0_i32 : i32
  }
  func.func @transform_1(%arg0: i32, %arg1: i32) -> (i32, i32) {
    %c0_i32 = arith.constant 0 : i32
    return %arg0, %arg1 : i32, i32
  }
  func.func @transform_2(%arg0: i32, %arg1: i32) -> (i32, i32) {
    %c0_i32 = arith.constant 0 : i32
    %c0_i32_0 = arith.constant 0 : i32
    return %arg0, %c0_i32 : i32, i32
  }
  func.func @transform_3(%arg0: i32, %arg1: i32) -> (i32, i32) {
    %c0_i32 = arith.constant 0 : i32
    %c0_i32_0 = arith.constant 0 : i32
    return %c0_i32, %arg1 : i32, i32
  }
  func.func @transform_4(%arg0: i32, %arg1: i32) -> (i32, i32) {
    %c0_i32 = arith.constant 0 : i32
    return %arg0, %arg1 : i32, i32
  }
}

</mosaic_0001>

<llo_original>
// kernel: tpu_custom_call.1
$region0: #{tpu_custom_call.1}
  #allocation0 [shape = 'u32[]', space=smem, size = 0x4, offset = 0x4, fixed_abs, tag = 'smem constant byte address 0x4 - core index']
  #allocation1 [shape = 'u32[144,128]{1,0:T(1,128)}', space=vmem, size = 0x12000, scoped, tag = 'internal scratch']
  #allocation2 [shape = 'f32[1]{0:T(128)S(6)}', space=smem, size = 0x200, scoped, tag = 'scoped memory for tpu_custom_call.1']
  %s0 = inlined_call_operand.<no memory space> [shape: f32[1], index: 0, kind: input, shape index: {}]
  %s1 = inlined_call_operand.hbm [shape: f32[256,512], index: 1, kind: input, shape index: {}]
  %s2 = inlined_call_operand.vmem [shape: f32[256,4], index: 2, kind: input, shape index: {}]
  %s3 = inlined_call_operand.vmem [shape: f32[4,512], index: 3, kind: input, shape index: {}]
  %s4 = inlined_call_operand.hbm [shape: f32[256,512], index: 4, kind: output, shape index: {}]
  %s5 = sld [smem:[#allocation0]]
  $region53: #{tpu_custom_call.1} parent=0
    _
  %s7 = ssub.s32 1, %s5
  %s8 = scalar_select 0, %s7, %s5
  %9 = sst [smem:[#allocation2]] %s0
  $region1: #{tpu_custom_call.1} parent=0
    #allocation3 [shape = 'u8[262144]{0}', space=vmem, size = 0x40000, scoped, tag = 'input window, operand 1']
    #allocation4 [shape = 's32[2]{0}', space=sflag, size = 0x8, scoped, tag = 'scoped memory for tpu_custom_call.1']
    #allocation5 [shape = 's32[2]{0}', space=sflag, size = 0x8, scoped, tag = 'scoped memory for tpu_custom_call.1']
    #allocation6 [shape = 'u8[262144]{0}', space=vmem, size = 0x40000, scoped, tag = 'output window, operand 0']
    %10 = vsyncpa [#allocation4], 0
    %s11 = scalar_lea.sflag [#allocation4], 1
    %12 = vsyncpa %s11, 0
    %13 = vsyncpa [#allocation5], 0
    %s14 = scalar_lea.sflag [#allocation5], 1
    %15 = vsyncpa %s14, 0
    loop: start=0, step=1, limit=6
    $region2: #{tpu_custom_call.1} parent=1 // loop_pre_header
      _
    $region3: #{tpu_custom_call.1} parent=1 // loop_header
      %s17 = sphi 0, %s21
      %p18 = scmp.ge.s32.totalorder %s17, 6
      %s24 = sphi 0, %s36
      %s25 = sphi 0, %s32
      %s26 = sphi 0, %s24
      %s27 = sphi 0, %s25
      %s28 = sphi 0, %s26
      %s29 = sphi 0, %s27
      %s37 = sphi 0, %s37
      %s39 = sphi 0, %s37
      %s40 = sphi 0, %s39
      %s54 = sphi 0, %s40
      %s62 = sphi 0, %s64
      %s65 = sphi 0, %s62
      %s66 = sphi 0, %s65
      %s82 = sphi 0, %s66
      %s88 = sphi 0, %s90
      %s91 = sphi 0, %s88
      %s92 = sphi 0, %s91
      %s108 = sphi 0, %s92
      %s114 = sphi 0, %s116
      %s117 = sphi 0, %s114
      %s118 = sphi 0, %s117
      %s134 = sphi 0, %s118
      %s142 = sphi 0, %s144
      %s145 = sphi 0, %s142
      %s146 = sphi 0, %s145
      %s162 = sphi 0, %s146
    $region4: #{tpu_custom_call.1} parent=1 // loop_header_branch
      %20 = sbr.rel (%p18) target = $region8
    $region5: #{tpu_custom_call.1} parent=1 // loop_body
      %s22 = ssub.s32 %s17, 1
      %s23 = ssub.s32 %s17, 2
      %s30 = sadd.s32 1, %s25
      %p31 = scmp.ge.s32.totalorder %s30, 2
      %s32 = scalar_select %p31, 0, %s30
      %s33 = sadd.s32 1, %s24
      %s34 = scalar_select %p31, %s33, %s24
      %p35 = scmp.ge.s32.totalorder %s34, 2
      %s36 = scalar_select %p35, 0, %s34
      %s38 = sadd.s32 %s37, 1
      %p41 = scmp.eq.s32.totalorder %s17, 3
      %p42 = scmp.ne.s32.totalorder %s37, %s39
      %p43 = scmp.eq.s32.totalorder %s17, 0
      %p44 = por %p42, %p43
      %p45 = scmp.ne.s32.totalorder %s37, %s39
      %p46 = scmp.eq.s32.totalorder %s22, 3
      %p47 = por %p45, %p46
      %p48 = scmp.ne.s32.totalorder %s39, %s40
      %p49 = scmp.eq.s32.totalorder %s22, 0
      %p50 = por %p48, %p49
      %p51 = scmp.ne.s32.totalorder %s39, %s40
      %p52 = scmp.eq.s32.totalorder %s23, 3
      %p53 = por %p51, %p52
      %p55 = scmp.ne.s32.totalorder %s40, %s54
      %p56 = scmp.eq.s32.totalorder %s23, 0
      %p57 = por %p55, %p56
      %s58 = ssub.s32 %s24, %s36
      %s59 = ssub.s32 %s25, %s32
      %s60 = sor.u32 %s58, %s59
      %p61 = scmp.eq.s32.totalorder %s60, 0
      %s63 = sadd.s32 %s62, 1
      %s64 = scalar_select %p61, %s62, %s63
      %p67 = pneg %p61
      %p68 = scmp.eq.s32.totalorder %s17, 3
      %p69 = por %p67, %p68
      %p70 = scmp.ne.s32.totalorder %s62, %s65
      %p71 = scmp.eq.s32.totalorder %s17, 0
      %p72 = por %p70, %p71
      %p73 = scmp.ne.s32.totalorder %s62, %s65
      %p74 = scmp.eq.s32.totalorder %s22, 3
      %p75 = por %p73, %p74
      %p76 = scmp.ne.s32.totalorder %s65, %s66
      %p77 = scmp.eq.s32.totalorder %s22, 0
      %p78 = por %p76, %p77
      %p79 = scmp.ne.s32.totalorder %s65, %s66
      %p80 = scmp.eq.s32.totalorder %s23, 3
      %p81 = por %p79, %p80
      %p83 = scmp.ne.s32.totalorder %s66, %s82
      %p84 = scmp.eq.s32.totalorder %s23, 0
      %p85 = por %p83, %p84
      %s86 = ssub.s32 %s24, %s36
      %p87 = scmp.eq.s32.totalorder %s86, 0
      %s89 = sadd.s32 %s88, 1
      %s90 = scalar_select %p87, %s88, %s89
      %p93 = pneg %p87
      %p94 = scmp.eq.s32.totalorder %s17, 3
      %p95 = por %p93, %p94
      %p96 = scmp.ne.s32.totalorder %s88, %s91
      %p97 = scmp.eq.s32.totalorder %s17, 0
      %p98 = por %p96, %p97
      %p99 = scmp.ne.s32.totalorder %s88, %s91
      %p100 = scmp.eq.s32.totalorder %s22, 3
      %p101 = por %p99, %p100
      %p102 = scmp.ne.s32.totalorder %s91, %s92
      %p103 = scmp.eq.s32.totalorder %s22, 0
      %p104 = por %p102, %p103
      %p105 = scmp.ne.s32.totalorder %s91, %s92
      %p106 = scmp.eq.s32.totalorder %s23, 3
      %p107 = por %p105, %p106
      %p109 = scmp.ne.s32.totalorder %s92, %s108
      %p110 = scmp.eq.s32.totalorder %s23, 0
      %p111 = por %p109, %p110
      %s112 = ssub.s32 %s25, %s32
      %p113 = scmp.eq.s32.totalorder %s112, 0
      %s115 = sadd.s32 %s114, 1
      %s116 = scalar_select %p113, %s114, %s115
      %p119 = pneg %p113
      %p120 = scmp.eq.s32.totalorder %s17, 3
      %p121 = por %p119, %p120
      %p122 = scmp.ne.s32.totalorder %s114, %s117
      %p123 = scmp.eq.s32.totalorder %s17, 0
      %p124 = por %p122, %p123
      %p125 = scmp.ne.s32.totalorder %s114, %s117
      %p126 = scmp.eq.s32.totalorder %s22, 3
      %p127 = por %p125, %p126
      %p128 = scmp.ne.s32.totalorder %s117, %s118
      %p129 = scmp.eq.s32.totalorder %s22, 0
      %p130 = por %p128, %p129
      %p131 = scmp.ne.s32.totalorder %s117, %s118
      %p132 = scmp.eq.s32.totalorder %s23, 3
      %p133 = por %p131, %p132
      %p135 = scmp.ne.s32.totalorder %s118, %s134
      %p136 = scmp.eq.s32.totalorder %s23, 0
      %p137 = por %p135, %p136
      %s138 = ssub.s32 %s24, %s36
      %s139 = ssub.s32 %s25, %s32
      %s140 = sor.u32 %s138, %s139
      %p141 = scmp.eq.s32.totalorder %s140, 0
      %s143 = sadd.s32 %s142, 1
      %s144 = scalar_select %p141, %s142, %s143
      %p147 = pneg %p141
      %p148 = scmp.eq.s32.totalorder %s17, 3
      %p149 = por %p147, %p148
      %p150 = scmp.ne.s32.totalorder %s142, %s145
      %p151 = scmp.eq.s32.totalorder %s17, 0
      %p152 = por %p150, %p151
      %p153 = scmp.ne.s32.totalorder %s142, %s145
      %p154 = scmp.eq.s32.totalorder %s22, 3
      %p155 = por %p153, %p154
      %p156 = scmp.ne.s32.totalorder %s145, %s146
      %p157 = scmp.eq.s32.totalorder %s22, 0
      %p158 = por %p156, %p157
      %p159 = scmp.ne.s32.totalorder %s145, %s146
      %p160 = scmp.eq.s32.totalorder %s23, 3
      %p161 = por %p159, %p160
      %p163 = scmp.ne.s32.totalorder %s146, %s162
      %p164 = scmp.eq.s32.totalorder %s23, 0
      %p165 = por %p163, %p164
      %p166 = scmp.le.s32.totalorder 1, %s17
      %p167 = scmp.lt.s32.totalorder %s17, 5
      %p168 = pnand %p166, %p167
      %p169 = pneg %p168
      // Predicated region
      $region9: #{tpu_custom_call.1} parent=5 // pred_check
        _
      $region10: #{tpu_custom_call.1} parent=5 // pred_check_branch
        %171 = sbr.rel (%p168) target = $region12
      $region11: #{tpu_custom_call.1} parent=5 // pred_region
        %s172 = ssub.s32 %s17, 1
        // Predicated region
        $region13: #{tpu_custom_call.1} parent=11 // pred_check
          %p173 = pneg %p50
        $region14: #{tpu_custom_call.1} parent=11 // pred_check_branch
          %175 = sbr.rel (%p173) target = $region16
        $region15: #{tpu_custom_call.1} parent=11 // pred_region
          _
        $region16: #{tpu_custom_call.1} parent=11 // pred_fallthru
          _
      $region12: #{tpu_custom_call.1} parent=5 // pred_fallthru
        _
      %p176 = scmp.lt.s32.totalorder %s17, 4
      // Predicated region
      $region17: #{tpu_custom_call.1} parent=5 // pred_check
        %p177 = pneg %p176
      $region18: #{tpu_custom_call.1} parent=5 // pred_check_branch
        %179 = sbr.rel (%p177) target = $region20
      $region19: #{tpu_custom_call.1} parent=5 // pred_region
        // Predicated region
        $region21: #{tpu_custom_call.1} parent=19 // pred_check
          %p180 = pneg %p72
        $region22: #{tpu_custom_call.1} parent=19 // pred_check_branch
          %182 = sbr.rel (%p180) target = $region24
        $region23: #{tpu_custom_call.1} parent=19 // pred_region
          %s183 = sand.u32 %s62, 1
          %s184 = scalar_lea.sflag [#allocation4], %s183
          %s185 = sand.u32 %s62, 1
          %s186 = smul.addr %s185, 256
          %s187 = scalar_lea.vmem [#allocation3], %s186
          %s188 = smul.u32 16, %s24
          %s189 = smul.u32 2, %s25
          %s191 = ssub.s32 4096, 4096
          %192 = vsyncadd %s184, %s191
          %s193 = smul.addr %s188, 4
          %s194 = sadd.s32 %s189, %s193
          %s195 = smul.addr %s194, 128
          %s196 = scalar_lea.hbm %s1, %s195
          %s197 = sshll.u32 %s187, 4
          %s198 = int_to_ptr.vmem [resolvable:$true] %s197
          %203 = dma.hbm_to_vmem [thread:$0]  %s196, 4096, %s198, %s184, 512, 256, 16
        $region24: #{tpu_custom_call.1} parent=19 // pred_fallthru
          _
        // Predicated region
        $region25: #{tpu_custom_call.1} parent=19 // pred_check
          %p204 = pneg %p98
        $region26: #{tpu_custom_call.1} parent=19 // pred_check_branch
          %206 = sbr.rel (%p204) target = $region28
        $region27: #{tpu_custom_call.1} parent=19 // pred_region
          %s207 = smul.u32 16, %s24
          %p208 = scmp.lt.s32.totalorder %s207, 31
          %s209 = scalar_select %p208, %s207, 31
          %s210 = smul.addr %s209, 8
          %s211 = scalar_lea.vmem %s2, %s210
          %s212 = smul.u32 16, %s24
        $region28: #{tpu_custom_call.1} parent=19 // pred_fallthru
          _
        // Predicated region
        $region29: #{tpu_custom_call.1} parent=19 // pred_check
          %p213 = pneg %p124
        $region30: #{tpu_custom_call.1} parent=19 // pred_check_branch
          %215 = sbr.rel (%p213) target = $region32
        $region31: #{tpu_custom_call.1} parent=19 // pred_region
          %s216 = smul.u32 2, %s25
          %p217 = scmp.lt.s32.totalorder %s216, 3
          %s218 = scalar_select %p217, %s216, 3
          %s219 = smul.addr %s218, 4
          %s220 = scalar_lea.vmem %s3, %s219
          %s221 = smul.u32 2, %s25
        $region32: #{tpu_custom_call.1} parent=19 // pred_fallthru
          _
      $region20: #{tpu_custom_call.1} parent=5 // pred_fallthru
        _
      %p222 = scmp.le.s32.totalorder 1, %s17
      %p223 = scmp.lt.s32.totalorder %s17, 5
      %p224 = pnand %p222, %p223
      %p225 = pneg %p224
      // Predicated region
      $region33: #{tpu_custom_call.1} parent=5 // pred_check
        _
      $region34: #{tpu_custom_call.1} parent=5 // pred_check_branch
        %227 = sbr.rel (%p224) target = $region36
      $region35: #{tpu_custom_call.1} parent=5 // pred_region
        %s228 = ssub.s32 %s17, 1
        %s229 = sand.u32 %s65, 1
        %s230 = scalar_lea.sflag [#allocation4], %s229
        %s231 = sand.u32 %s65, 1
        %s232 = smul.addr %s231, 256
        %s233 = scalar_lea.vmem [#allocation3], %s232
        // Predicated region
        $region37: #{tpu_custom_call.1} parent=35 // pred_check
          %p234 = pneg %p78
        $region38: #{tpu_custom_call.1} parent=35 // pred_check_branch
          %236 = sbr.rel (%p234) target = $region40
        $region39: #{tpu_custom_call.1} parent=35 // pred_region
          %237 = dma.done %s230, 4096
        $region40: #{tpu_custom_call.1} parent=35 // pred_fallthru
          _
        %p238 = pneg %p50
        %p239 = pneg %p47
        %s240 = sand.u32 %s65, 1
        %s241 = scalar_lea.sflag [#allocation4], %s240
        %s242 = sand.u32 %s65, 1
        %s243 = smul.addr %s242, 256
        %s244 = scalar_lea.vmem [#allocation3], %s243
        %p245 = pneg %p78
        %p246 = pneg %p75
        %s247 = smul.u32 16, %s26
        %p248 = scmp.lt.s32.totalorder %s247, 31
        %s249 = scalar_select %p248, %s247, 31
        %s250 = smul.addr %s249, 8
        %s251 = scalar_lea.vmem %s2, %s250
        %p252 = pneg %p104
        %p253 = pneg %p101
        %s254 = smul.u32 2, %s27
        %p255 = scmp.lt.s32.totalorder %s254, 3
        %s256 = scalar_select %p255, %s254, 3
        %s257 = smul.addr %s256, 4
        %s258 = scalar_lea.vmem %s3, %s257
        %p259 = pneg %p130
        %p260 = pneg %p127
        %p261 = pneg %p158
        %p262 = pneg %p155
        %s263 = sand.u32 %s145, 1
        %s264 = scalar_lea.sflag [#allocation5], %s263
        %s265 = sand.u32 %s145, 1
        %s266 = smul.addr %s265, 256
        %s267 = scalar_lea.vmem [#allocation6], %s266
        %s268 = smul.u32 16, %s26
        %s269 = smul.u32 2, %s27
        %s270 = smul.u32 16, %s26
        %p271 = scmp.lt.s32.totalorder %s270, 31
        %s272 = scalar_select %p271, %s270, 31
        %s273 = smul.addr %s272, 8
        %s274 = scalar_lea.vmem %s2, %s273
        %s275 = smul.u32 16, %s26
        %s276 = smul.u32 2, %s27
        %p277 = scmp.lt.s32.totalorder %s276, 3
        %s278 = scalar_select %p277, %s276, 3
        %s279 = smul.addr %s278, 4
        %s280 = scalar_lea.vmem %s3, %s279
        %s281 = smul.u32 2, %s27
        %s282 = smul.u32 16, %s26
        %s283 = smul.u32 2, %s27
        %v284 = vld [vmem:[%s274] sm:$0xff]
        %v285 = vld [vmem:[%s274 + $0x8] sm:$0xff]
        %v286 = vld [vmem:[%s274 + $0x10] sm:$0xff]
        %v287 = vld [vmem:[%s274 + $0x18] sm:$0xff]
        %v288 = vld [vmem:[%s274 + $0x20] sm:$0xff]
        %v289 = vld [vmem:[%s274 + $0x28] sm:$0xff]
        %v290 = vld [vmem:[%s274 + $0x30] sm:$0xff]
        %v291 = vld [vmem:[%s274 + $0x38] sm:$0xff]
        %v292 = vld [vmem:[%s274 + $0x40] sm:$0xff]
        %v293 = vld [vmem:[%s274 + $0x48] sm:$0xff]
        %v294 = vld [vmem:[%s274 + $0x50] sm:$0xff]
        %v295 = vld [vmem:[%s274 + $0x58] sm:$0xff]
        %v296 = vld [vmem:[%s274 + $0x60] sm:$0xff]
        %v297 = vld [vmem:[%s274 + $0x68] sm:$0xff]
        %v298 = vld [vmem:[%s274 + $0x70] sm:$0xff]
        %v299 = vld [vmem:[%s274 + $0x78] sm:$0xff]
        %v300 = vld [vmem:[%s280] sm:$0xff]
        %v302 = vcombine.high %v300, %v300
        %vm303 = vcmask 31744
        %v305 = vsel %vm303, %v284, 0
        %v308 = vsel %vm303, %v285, 0
        %v311 = vsel %vm303, %v286, 0
        %v314 = vsel %vm303, %v287, 0
        %v317 = vsel %vm303, %v288, 0
        %v320 = vsel %vm303, %v289, 0
        %v323 = vsel %vm303, %v290, 0
        %v326 = vsel %vm303, %v291, 0
        %v329 = vsel %vm303, %v292, 0
        %v332 = vsel %vm303, %v293, 0
        %v335 = vsel %vm303, %v294, 0
        %v338 = vsel %vm303, %v295, 0
        %v341 = vsel %vm303, %v296, 0
        %v344 = vsel %vm303, %v297, 0
        %v347 = vsel %vm303, %v298, 0
        %v350 = vsel %vm303, %v299, 0
        %vm352 = vcmask 1043456
        %v353 = vsel %vm352, %v300, 0
        %v355 = vsel %vm352, %v302, 0
        %357 = vmatprep.subr.mxu0 %v355
        %358 = vmatpush1.msra.mxu0 %v353
        %359 = vmatprep.subr.mxu0 0.0
        %360 = vmatpush1.msra.mxu0 0.0
        %361 = vmatprep.subr.mxu0 0.0
        %362 = vmatpush1.msra.mxu0 0.0
        %363 = vmatprep.subr.mxu0 0.0
        %364 = vmatpush1.msra.mxu0 0.0
        %365 = vmatprep.subr.mxu0 0.0
        %366 = vmatpush1.msra.mxu0 0.0
        %367 = vmatprep.subr.mxu0 0.0
        %368 = vmatpush1.msra.mxu0 0.0
        %369 = vmatprep.subr.mxu0 0.0
        %370 = vmatpush1.msra.mxu0 0.0
        %371 = vmatprep.subr.mxu0 0.0
        %372 = vmatpush1.msra.mxu0 0.0
        %373 = vmatprep.subr.mxu0 0.0
        %374 = vmatpush1.msra.mxu0 0.0
        %375 = vmatprep.subr.mxu0 0.0
        %376 = vmatpush1.msra.mxu0 0.0
        %377 = vmatprep.subr.mxu0 0.0
        %378 = vmatpush1.msra.mxu0 0.0
        %379 = vmatprep.subr.mxu0 0.0
        %380 = vmatpush1.msra.mxu0 0.0
        %381 = vmatprep.subr.mxu0 0.0
        %382 = vmatpush1.msra.mxu0 0.0
        %383 = vmatprep.subr.mxu0 0.0
        %384 = vmatpush1.msra.mxu0 0.0
        %385 = vmatprep.subr.mxu0 0.0
        %386 = vmatpush1.msra.mxu0 0.0
        %387 = vmatprep.subr.mxu0 0.0
        %388 = vmatpush1.msra.mxu0 0.0
        %389 = vmatprep.subr.mxu0 0.0
        %390 = vmatpush1.msra.mxu0 0.0
        %391 = vmatprep.subr.mxu0 0.0
        %392 = vmatpush1.msra.mxu0 0.0
        %393 = vmatprep.subr.mxu0 0.0
        %394 = vmatpush1.msra.mxu0 0.0
        %395 = vmatprep.subr.mxu0 0.0
        %396 = vmatpush1.msra.mxu0 0.0
        %397 = vmatprep.subr.mxu0 0.0
        %398 = vmatpush1.msra.mxu0 0.0
        %399 = vmatprep.subr.mxu0 0.0
        %400 = vmatpush1.msra.mxu0 0.0
        %401 = vmatprep.subr.mxu0 0.0
        %402 = vmatpush1.msra.mxu0 0.0
        %403 = vmatprep.subr.mxu0 0.0
        %404 = vmatpush1.msra.mxu0 0.0
        %405 = vmatprep.subr.mxu0 0.0
        %406 = vmatpush1.msra.mxu0 0.0
        %407 = vmatprep.subr.mxu0 0.0
        %408 = vmatpush1.msra.mxu0 0.0
        %409 = vmatprep.subr.mxu0 0.0
        %410 = vmatpush1.msra.mxu0 0.0
        %411 = vmatprep.subr.mxu0 0.0
        %412 = vmatpush1.msra.mxu0 0.0
        %413 = vmatprep.subr.mxu0 0.0
        %414 = vmatpush1.msra.mxu0 0.0
        %415 = vmatprep.subr.mxu0 0.0
        %416 = vmatpush1.msra.mxu0 0.0
        %417 = vmatprep.subr.mxu0 0.0
        %418 = vmatpush1.msra.mxu0 0.0
        %419 = vmatprep.subr.mxu0 0.0
        %420 = vmatpush1.msra.mxu0 0.0
        %421 = vmatprep.mubr.f32.mxu0 0.0
        %422 = vmatmul.mubr.f32.gmra.mrb[0].mxu0 %v305
        %v423 = vpop.f32.mrb[0].mxu0
        %v424 = vadd.f32 0.0, %v423
        %v425 = vpop.f32.mrb[0].mxu0
        %v426 = vadd.f32 0.0, %v425
        %427 = vmatprep.mubr.f32.mxu0 0.0
        %428 = vmatmul.mubr.f32.gmra.mrb[0].mxu0 %v308
        %v429 = vpop.f32.mrb[0].mxu0
        %v430 = vadd.f32 0.0, %v429
        %v431 = vpop.f32.mrb[0].mxu0
        %v432 = vadd.f32 0.0, %v431
        %433 = vmatprep.mubr.f32.mxu0 0.0
        %434 = vmatmul.mubr.f32.gmra.mrb[0].mxu0 %v311
        %v435 = vpop.f32.mrb[0].mxu0
        %v436 = vadd.f32 0.0, %v435
        %v437 = vpop.f32.mrb[0].mxu0
        %v438 = vadd.f32 0.0, %v437
        %439 = vmatprep.mubr.f32.mxu0 0.0
        %440 = vmatmul.mubr.f32.gmra.mrb[0].mxu0 %v314
        %v441 = vpop.f32.mrb[0].mxu0
        %v442 = vadd.f32 0.0, %v441
        %v443 = vpop.f32.mrb[0].mxu0
        %v444 = vadd.f32 0.0, %v443
        %445 = vmatprep.mubr.f32.mxu0 0.0
        %446 = vmatmul.mubr.f32.gmra.mrb[0].mxu0 %v317
        %v447 = vpop.f32.mrb[0].mxu0
        %v448 = vadd.f32 0.0, %v447
        %v449 = vpop.f32.mrb[0].mxu0
        %v450 = vadd.f32 0.0, %v449
        %451 = vmatprep.mubr.f32.mxu0 0.0
        %452 = vmatmul.mubr.f32.gmra.mrb[0].mxu0 %v320
        %v453 = vpop.f32.mrb[0].mxu0
        %v454 = vadd.f32 0.0, %v453
        %v455 = vpop.f32.mrb[0].mxu0
        %v456 = vadd.f32 0.0, %v455
        %457 = vmatprep.mubr.f32.mxu0 0.0
        %458 = vmatmul.mubr.f32.gmra.mrb[0].mxu0 %v323
        %v459 = vpop.f32.mrb[0].mxu0
        %v460 = vadd.f32 0.0, %v459
        %v461 = vpop.f32.mrb[0].mxu0
        %v462 = vadd.f32 0.0, %v461
        %463 = vmatprep.mubr.f32.mxu0 0.0
        %464 = vmatmul.mubr.f32.gmra.mrb[0].mxu0 %v326
        %v465 = vpop.f32.mrb[0].mxu0
        %v466 = vadd.f32 0.0, %v465
        %v467 = vpop.f32.mrb[0].mxu0
        %v468 = vadd.f32 0.0, %v467
        %469 = vmatprep.mubr.f32.mxu0 0.0
        %470 = vmatmul.mubr.f32.gmra.mrb[0].mxu0 %v329
        %v471 = vpop.f32.mrb[0].mxu0
        %v472 = vadd.f32 0.0, %v471
        %v473 = vpop.f32.mrb[0].mxu0
        %v474 = vadd.f32 0.0, %v473
        %475 = vmatprep.mubr.f32.mxu0 0.0
        %476 = vmatmul.mubr.f32.gmra.mrb[0].mxu0 %v332
        %v477 = vpop.f32.mrb[0].mxu0
        %v478 = vadd.f32 0.0, %v477
        %v479 = vpop.f32.mrb[0].mxu0
        %v480 = vadd.f32 0.0, %v479
        %481 = vmatprep.mubr.f32.mxu0 0.0
        %482 = vmatmul.mubr.f32.gmra.mrb[0].mxu0 %v335
        %v483 = vpop.f32.mrb[0].mxu0
        %v484 = vadd.f32 0.0, %v483
        %v485 = vpop.f32.mrb[0].mxu0
        %v486 = vadd.f32 0.0, %v485
        %487 = vmatprep.mubr.f32.mxu0 0.0
        %488 = vmatmul.mubr.f32.gmra.mrb[0].mxu0 %v338
        %v489 = vpop.f32.mrb[0].mxu0
        %v490 = vadd.f32 0.0, %v489
        %v491 = vpop.f32.mrb[0].mxu0
        %v492 = vadd.f32 0.0, %v491
        %493 = vmatprep.mubr.f32.mxu0 0.0
        %494 = vmatmul.mubr.f32.gmra.mrb[0].mxu0 %v341
        %v495 = vpop.f32.mrb[0].mxu0
        %v496 = vadd.f32 0.0, %v495
        %v497 = vpop.f32.mrb[0].mxu0
        %v498 = vadd.f32 0.0, %v497
        %499 = vmatprep.mubr.f32.mxu0 0.0
        %500 = vmatmul.mubr.f32.gmra.mrb[0].mxu0 %v344
        %v501 = vpop.f32.mrb[0].mxu0
        %v502 = vadd.f32 0.0, %v501
        %v503 = vpop.f32.mrb[0].mxu0
        %v504 = vadd.f32 0.0, %v503
        %505 = vmatprep.mubr.f32.mxu0 0.0
        %506 = vmatmul.mubr.f32.gmra.mrb[0].mxu0 %v347
        %v507 = vpop.f32.mrb[0].mxu0
        %v508 = vadd.f32 0.0, %v507
        %v509 = vpop.f32.mrb[0].mxu0
        %v510 = vadd.f32 0.0, %v509
        %511 = vmatprep.mubr.f32.mxu0 0.0
        %512 = vmatmul.mubr.f32.gmra.mrb[0].mxu0 %v350
        %v513 = vpop.f32.mrb[0].mxu0
        %v514 = vadd.f32 0.0, %v513
        %v515 = vpop.f32.mrb[0].mxu0
        %v516 = vadd.f32 0.0, %v515
        %517 = vdwg.mxu0
        %v518 = vld [vmem:[%s233] sm:$0xff]
        %v519 = vld [vmem:[%s233 + $0x8] sm:$0xff]
        %v520 = vld [vmem:[%s233 + $0x10] sm:$0xff]
        %v521 = vld [vmem:[%s233 + $0x18] sm:$0xff]
        %v522 = vld [vmem:[%s233 + $0x20] sm:$0xff]
        %v523 = vld [vmem:[%s233 + $0x28] sm:$0xff]
        %v524 = vld [vmem:[%s233 + $0x30] sm:$0xff]
        %v525 = vld [vmem:[%s233 + $0x38] sm:$0xff]
        %v526 = vld [vmem:[%s233 + $0x40] sm:$0xff]
        %v527 = vld [vmem:[%s233 + $0x48] sm:$0xff]
        %v528 = vld [vmem:[%s233 + $0x50] sm:$0xff]
        %v529 = vld [vmem:[%s233 + $0x58] sm:$0xff]
        %v530 = vld [vmem:[%s233 + $0x60] sm:$0xff]
        %v531 = vld [vmem:[%s233 + $0x68] sm:$0xff]
        %v532 = vld [vmem:[%s233 + $0x70] sm:$0xff]
        %v533 = vld [vmem:[%s233 + $0x78] sm:$0xff]
        %v534 = vld [vmem:[%s233 + $0x80] sm:$0xff]
        %v535 = vld [vmem:[%s233 + $0x88] sm:$0xff]
        %v536 = vld [vmem:[%s233 + $0x90] sm:$0xff]
        %v537 = vld [vmem:[%s233 + $0x98] sm:$0xff]
        %v538 = vld [vmem:[%s233 + $0xa0] sm:$0xff]
        %v539 = vld [vmem:[%s233 + $0xa8] sm:$0xff]
        %v540 = vld [vmem:[%s233 + $0xb0] sm:$0xff]
        %v541 = vld [vmem:[%s233 + $0xb8] sm:$0xff]
        %v542 = vld [vmem:[%s233 + $0xc0] sm:$0xff]
        %v543 = vld [vmem:[%s233 + $0xc8] sm:$0xff]
        %v544 = vld [vmem:[%s233 + $0xd0] sm:$0xff]
        %v545 = vld [vmem:[%s233 + $0xd8] sm:$0xff]
        %v546 = vld [vmem:[%s233 + $0xe0] sm:$0xff]
        %v547 = vld [vmem:[%s233 + $0xe8] sm:$0xff]
        %v548 = vld [vmem:[%s233 + $0xf0] sm:$0xff]
        %v549 = vld [vmem:[%s233 + $0xf8] sm:$0xff]
        %s550 = sld [smem:[#allocation2]]
        %v551 = vstv %s550
        %v552 = vmul.f32 %v424, %v551
        %v553 = vmul.f32 %v426, %v551
        %v554 = vmul.f32 %v430, %v551
        %v555 = vmul.f32 %v432, %v551
        %v556 = vmul.f32 %v436, %v551
        %v557 = vmul.f32 %v438, %v551
        %v558 = vmul.f32 %v442, %v551
        %v559 = vmul.f32 %v444, %v551
        %v560 = vmul.f32 %v448, %v551
        %v561 = vmul.f32 %v450, %v551
        %v562 = vmul.f32 %v454, %v551
        %v563 = vmul.f32 %v456, %v551
        %v564 = vmul.f32 %v460, %v551
        %v565 = vmul.f32 %v462, %v551
        %v566 = vmul.f32 %v466, %v551
        %v567 = vmul.f32 %v468, %v551
        %v568 = vmul.f32 %v472, %v551
        %v569 = vmul.f32 %v474, %v551
        %v570 = vmul.f32 %v478, %v551
        %v571 = vmul.f32 %v480, %v551
        %v572 = vmul.f32 %v484, %v551
        %v573 = vmul.f32 %v486, %v551
        %v574 = vmul.f32 %v490, %v551
        %v575 = vmul.f32 %v492, %v551
        %v576 = vmul.f32 %v496, %v551
        %v577 = vmul.f32 %v498, %v551
        %v578 = vmul.f32 %v502, %v551
        %v579 = vmul.f32 %v504, %v551
        %v580 = vmul.f32 %v508, %v551
        %v581 = vmul.f32 %v510, %v551
        %v582 = vmul.f32 %v514, %v551
        %v583 = vmul.f32 %v516, %v551
        %v584 = vadd.f32 %v518, %v552
        %v585 = vadd.f32 %v519, %v553
        %v586 = vadd.f32 %v520, %v554
        %v587 = vadd.f32 %v521, %v555
        %v588 = vadd.f32 %v522, %v556
        %v589 = vadd.f32 %v523, %v557
        %v590 = vadd.f32 %v524, %v558
        %v591 = vadd.f32 %v525, %v559
        %v592 = vadd.f32 %v526, %v560
        %v593 = vadd.f32 %v527, %v561
        %v594 = vadd.f32 %v528, %v562
        %v595 = vadd.f32 %v529, %v563
        %v596 = vadd.f32 %v530, %v564
        %v597 = vadd.f32 %v531, %v565
        %v598 = vadd.f32 %v532, %v566
        %v599 = vadd.f32 %v533, %v567
        %v600 = vadd.f32 %v534, %v568
        %v601 = vadd.f32 %v535, %v569
        %v602 = vadd.f32 %v536, %v570
        %v603 = vadd.f32 %v537, %v571
        %v604 = vadd.f32 %v538, %v572
        %v605 = vadd.f32 %v539, %v573
        %v606 = vadd.f32 %v540, %v574
        %v607 = vadd.f32 %v541, %v575
        %v608 = vadd.f32 %v542, %v576
        %v609 = vadd.f32 %v543, %v577
        %v610 = vadd.f32 %v544, %v578
        %v611 = vadd.f32 %v545, %v579
        %v612 = vadd.f32 %v546, %v580
        %v613 = vadd.f32 %v547, %v581
        %v614 = vadd.f32 %v548, %v582
        %v615 = vadd.f32 %v549, %v583
        %616 = vst [vmem:[%s267] sm:$0xff] %v584
        %617 = vst [vmem:[%s267 + $0x8] sm:$0xff] %v585
        %618 = vst [vmem:[%s267 + $0x10] sm:$0xff] %v586
        %619 = vst [vmem:[%s267 + $0x18] sm:$0xff] %v587
        %620 = vst [vmem:[%s267 + $0x20] sm:$0xff] %v588
        %621 = vst [vmem:[%s267 + $0x28] sm:$0xff] %v589
        %622 = vst [vmem:[%s267 + $0x30] sm:$0xff] %v590
        %623 = vst [vmem:[%s267 + $0x38] sm:$0xff] %v591
        %624 = vst [vmem:[%s267 + $0x40] sm:$0xff] %v592
        %625 = vst [vmem:[%s267 + $0x48] sm:$0xff] %v593
        %626 = vst [vmem:[%s267 + $0x50] sm:$0xff] %v594
        %627 = vst [vmem:[%s267 + $0x58] sm:$0xff] %v595
        %628 = vst [vmem:[%s267 + $0x60] sm:$0xff] %v596
        %629 = vst [vmem:[%s267 + $0x68] sm:$0xff] %v597
        %630 = vst [vmem:[%s267 + $0x70] sm:$0xff] %v598
        %631 = vst [vmem:[%s267 + $0x78] sm:$0xff] %v599
        %632 = vst [vmem:[%s267 + $0x80] sm:$0xff] %v600
        %633 = vst [vmem:[%s267 + $0x88] sm:$0xff] %v601
        %634 = vst [vmem:[%s267 + $0x90] sm:$0xff] %v602
        %635 = vst [vmem:[%s267 + $0x98] sm:$0xff] %v603
        %636 = vst [vmem:[%s267 + $0xa0] sm:$0xff] %v604
        %637 = vst [vmem:[%s267 + $0xa8] sm:$0xff] %v605
        %638 = vst [vmem:[%s267 + $0xb0] sm:$0xff] %v606
        %639 = vst [vmem:[%s267 + $0xb8] sm:$0xff] %v607
        %640 = vst [vmem:[%s267 + $0xc0] sm:$0xff] %v608
        %641 = vst [vmem:[%s267 + $0xc8] sm:$0xff] %v609
        %642 = vst [vmem:[%s267 + $0xd0] sm:$0xff] %v610
        %643 = vst [vmem:[%s267 + $0xd8] sm:$0xff] %v611
        %644 = vst [vmem:[%s267 + $0xe0] sm:$0xff] %v612
        %645 = vst [vmem:[%s267 + $0xe8] sm:$0xff] %v613
        %646 = vst [vmem:[%s267 + $0xf0] sm:$0xff] %v614
        %647 = vst [vmem:[%s267 + $0xf8] sm:$0xff] %v615
        %s648 = sand.u32 %s145, 1
        %s649 = scalar_lea.sflag [#allocation5], %s648
        %s650 = sand.u32 %s145, 1
        %s651 = smul.addr %s650, 256
        %s652 = scalar_lea.vmem [#allocation6], %s651
        // Predicated region
        $region41: #{tpu_custom_call.1} parent=35 // pred_check
          %p653 = pneg %p155
        $region42: #{tpu_custom_call.1} parent=35 // pred_check_branch
          %655 = sbr.rel (%p653) target = $region44
        $region43: #{tpu_custom_call.1} parent=35 // pred_region
          %s656 = smul.u32 16, %s26
          %s657 = smul.u32 2, %s27
          %s659 = ssub.s32 4096, 4096
          %660 = vsyncadd %s649, %s659
          %s661 = smul.addr %s656, 4
          %s662 = sadd.s32 %s657, %s661
          %s663 = smul.addr %s662, 128
          %s664 = scalar_lea.hbm %s4, %s663
          %s665 = sshll.u32 %s652, 4
          %s666 = int_to_ptr.vmem [resolvable:$true] %s665
          %671 = dma.vmem_to_hbm [thread:$0]  %s666, 4096, %s664, %s649, 256, 512, 16
        $region44: #{tpu_custom_call.1} parent=35 // pred_fallthru
          _
      $region36: #{tpu_custom_call.1} parent=5 // pred_fallthru
        _
      %p672 = scmp.le.s32.totalorder 2, %s17
      // Predicated region
      $region45: #{tpu_custom_call.1} parent=5 // pred_check
        %p673 = pneg %p672
      $region46: #{tpu_custom_call.1} parent=5 // pred_check_branch
        %675 = sbr.rel (%p673) target = $region48
      $region47: #{tpu_custom_call.1} parent=5 // pred_region
        %s676 = ssub.s32 %s17, 2
        // Predicated region
        $region49: #{tpu_custom_call.1} parent=47 // pred_check
          %p677 = pneg %p161
        $region50: #{tpu_custom_call.1} parent=47 // pred_check_branch
          %679 = sbr.rel (%p677) target = $region52
        $region51: #{tpu_custom_call.1} parent=47 // pred_region
          %s680 = sand.u32 %s146, 1
          %s681 = scalar_lea.sflag [#allocation5], %s680
          %s682 = sand.u32 %s146, 1
          %s683 = smul.addr %s682, 256
          %s684 = scalar_lea.vmem [#allocation6], %s683
          %685 = dma.done %s681, 4096
        $region52: #{tpu_custom_call.1} parent=47 // pred_fallthru
          _
      $region48: #{tpu_custom_call.1} parent=5 // pred_fallthru
        _
    $region6: #{tpu_custom_call.1} parent=1 // loop_footer
      %s21 = sadd.s32 1, %s17
    $region7: #{tpu_custom_call.1} parent=1 // loop_footer_branch
      %16 = sbr.rel target = $region3
    $region8: #{tpu_custom_call.1} parent=1 // loop_exit
      _
    %686 = vsyncpa [#allocation4], 1
    %s687 = scalar_lea.sflag [#allocation4], 1
    %688 = vsyncpa %s687, 1
    %689 = vsyncpa [#allocation5], 1
    %s690 = scalar_lea.sflag [#allocation5], 1
    %691 = vsyncpa %s690, 1

</llo_original>
